<compile_context>
chip_gen: v6e
topology: v6e:2x2x1
jax: 0.10.0
libtpu: 0.0.40
codegen_flags: <defaults>
</compile_context>

<pallas_src>
import jax
import jax.numpy as jnp
from jax.experimental import pallas as pl
from jax.experimental.pallas import tpu as pltpu

_LANE = 128            # TPU lane width
_MAX_BATCH_TILE = 512  # lane-tile upper bound (plenty for HBM roofline)
_INV_SQRT2 = 0.7071067811865476


def _round_up(x, m):
    return ((x + m - 1) // m) * m


def _gelu_exact(x):
    # torch.nn.GELU(approximate='none'): 0.5 * x * (1 + erf(x / sqrt(2)))
    return 0.5 * x * (1.0 + jax.lax.erf(x * _INV_SQRT2))


def _batch_tile_map(i):
    return (0, i)


def _resident_map(i):          # weights: same block every grid step -> no re-DMA
    return (0, 0)


def _actor_mlp_kernel(s_ref, a_ref, t_ref,
                      w1s_ref, w1a_ref, w1t_ref, b1_ref,
                      w2_ref, b2_ref,
                      w3_ref, b3_ref,
                      w4_ref, b4_ref,
                      o_ref):
    """Transposed MLP: features on sublanes, batch on lanes.

    s_ref:(S,TB)  a_ref:(A,TB)  t_ref:(1,TB)
    wK_ref: transposed weights (out_features, in_features); bK_ref:(out,1)
    o_ref:(action_dim, TB)
    """
    # Fused concat + first linear:
    #   (x @ W1).T = W1[:S].T @ s.T + W1[S:S+A].T @ a.T + W1[S+A:].T @ t.T
    h = jnp.dot(w1s_ref[...], s_ref[...], preferred_element_type=jnp.float32)
    h = h + jnp.dot(w1a_ref[...], a_ref[...], preferred_element_type=jnp.float32)
    h = h + w1t_ref[...] * t_ref[...]          # K==1 contraction as broadcast mul
    h = h + b1_ref[...]
    h = _gelu_exact(h)

    h = _gelu_exact(
        jnp.dot(w2_ref[...], h, preferred_element_type=jnp.float32) + b2_ref[...])
    h = _gelu_exact(
        jnp.dot(w3_ref[...], h, preferred_element_type=jnp.float32) + b3_ref[...])

    out = jnp.dot(w4_ref[...], h, preferred_element_type=jnp.float32) + b4_ref[...]
    o_ref[...] = out.astype(o_ref.dtype)


@jax.jit
def actor_vector_field_forward(states, actions, timesteps, params):
    """Pallas forward pass of ActorVectorField.

    states:    (B, state_dim)  float32
    actions:   (B, action_dim) float32
    timesteps: (B, 1)          float32
    params: dict with w1..w4 stored (in_features, out_features), b1..b4 (1, out)
    returns:   (B, action_dim) float32
    """
    B, S = states.shape
    A = actions.shape[1]
    H = params["w2"].shape[0]
    A_out = params["w4"].shape[1]

    # Batch tile on the lane axis; pad batch up to a whole number of tiles.
    TB = min(_MAX_BATCH_TILE, _round_up(B, _LANE))
    B_pad = _round_up(B, TB)
    pad = B_pad - B

    # Batch-in-lanes layout: transpose + pad in the wrapper (cheap layout
    # plumbing that buys lane-dense compute/stores inside the kernel).
    s_t = jnp.pad(states.astype(jnp.float32).T, ((0, 0), (0, pad)))
    a_t = jnp.pad(actions.astype(jnp.float32).T, ((0, 0), (0, pad)))
    t_t = jnp.pad(timesteps.astype(jnp.float32).T, ((0, 0), (0, pad)))

    # Split W1 row-wise (fuses the concat) and transpose all weights so the
    # kernel computes h.T = W.T @ x.T.
    w1 = params["w1"]
    w1s_t = w1[:S].T                       # (H, S)
    w1a_t = w1[S:S + A].T                  # (H, A)
    w1t_t = w1[S + A:].T                   # (H, 1)
    b1_t = params["b1"].reshape(-1, 1)     # (H, 1)
    w2_t = params["w2"].T                  # (H, H)
    b2_t = params["b2"].reshape(-1, 1)
    w3_t = params["w3"].T                  # (H, H)
    b3_t = params["b3"].reshape(-1, 1)
    w4_t = params["w4"].T                  # (A_out, H)
    b4_t = params["b4"].reshape(-1, 1)     # (A_out, 1)

    grid = (B_pad // TB,)

    in_specs = [
        pl.BlockSpec((S, TB), _batch_tile_map),
        pl.BlockSpec((A, TB), _batch_tile_map),
        pl.BlockSpec((1, TB), _batch_tile_map),
        pl.BlockSpec((H, S), _resident_map),
        pl.BlockSpec((H, A), _resident_map),
        pl.BlockSpec((H, 1), _resident_map),
        pl.BlockSpec((H, 1), _resident_map),
        pl.BlockSpec((H, H), _resident_map),
        pl.BlockSpec((H, 1), _resident_map),
        pl.BlockSpec((H, H), _resident_map),
        pl.BlockSpec((H, 1), _resident_map),
        pl.BlockSpec((A_out, H), _resident_map),
        pl.BlockSpec((A_out, 1), _resident_map),
    ]
    out_spec = pl.BlockSpec((A_out, TB), _batch_tile_map)

    out_t = pl.pallas_call(
        _actor_mlp_kernel,
        grid=grid,
        in_specs=in_specs,
        out_specs=out_spec,
        out_shape=jax.ShapeDtypeStruct((A_out, B_pad), jnp.float32),
        compiler_params=pltpu.CompilerParams(
            dimension_semantics=("parallel",)),
    )(s_t, a_t, t_t,
      w1s_t, w1a_t, w1t_t, b1_t,
      w2_t, b2_t, w3_t, b3_t, w4_t, b4_t)

    # Back to (B, action_dim); drop batch padding.
    return out_t[:, :B].T


def init_params(key, state_dim, action_dim, hidden_dim):
    """Deterministic synthetic init (uniform, scaled by fan-in) matching the
    layer shapes of ActorVectorField.__init__."""
    in_dim = state_dim + action_dim + 1
    dims = [(in_dim, hidden_dim),
            (hidden_dim, hidden_dim),
            (hidden_dim, hidden_dim),
            (hidden_dim, action_dim)]
    params = {}
    keys = jax.random.split(key, 2 * len(dims))
    for i, (d_in, d_out) in enumerate(dims):
        bound = 1.0 / jnp.sqrt(jnp.float32(d_in))
        params[f"w{i+1}"] = jax.random.uniform(
            keys[2 * i], (d_in, d_out), jnp.float32, -bound, bound)
        params[f"b{i+1}"] = jax.random.uniform(
            keys[2 * i + 1], (1, d_out), jnp.float32, -bound, bound)
    return params


def _reference_forward(states, actions, timesteps, params):
    x = jnp.concatenate([states, actions, timesteps], axis=-1)
    h = jax.nn.gelu(x @ params["w1"] + params["b1"], approximate=False)
    h = jax.nn.gelu(h @ params["w2"] + params["b2"], approximate=False)
    h = jax.nn.gelu(h @ params["w3"] + params["b3"], approximate=False)
    return h @ params["w4"] + params["b4"]


def _check(batch, state_dim, action_dim, hidden_dim, seed):
    key = jax.random.PRNGKey(seed)
    k_s, k_a, k_t, k_p = jax.random.split(key, 4)
    states = jax.random.normal(k_s, (batch, state_dim), jnp.float32)
    actions = jax.random.normal(k_a, (batch, action_dim), jnp.float32)
    timesteps = jax.random.uniform(k_t, (batch, 1), jnp.float32)
    params = init_params(k_p, state_dim, action_dim, hidden_dim)

    out = actor_vector_field_forward(states, actions, timesteps, params)
    out = jax.block_until_ready(out)

    ref = _reference_forward(states, actions, timesteps, params)
    assert out.shape == (batch, action_dim), out.shape
    err = jnp.max(jnp.abs(out - ref))
    assert jnp.allclose(out, ref, atol=1e-4, rtol=1e-4), f"max abs err {err}"


if __name__ == "__main__":
    # Primary small-shape check (PRNGKey(0), shapes consistent with the module).
    _check(batch=8, state_dim=12, action_dim=3, hidden_dim=32, seed=0)
    # Secondary check: module-default hidden=256, multi-tile batch grid + padding.
    _check(batch=700, state_dim=17, action_dim=6, hidden_dim=256, seed=0)
    print("KERNEL_OK")
</pallas_src>

<mosaic_0001>
module attributes {stable_mosaic.version = 11 : i64} {
  func.func @_actor_mlp_kernel(%arg0: i32, %arg1: memref<12x128xf32, #tpu.memory_space<vmem>>, %arg2: memref<3x128xf32, #tpu.memory_space<vmem>>, %arg3: memref<1x128xf32, #tpu.memory_space<vmem>>, %arg4: memref<32x12xf32, #tpu.memory_space<vmem>>, %arg5: memref<32x3xf32, #tpu.memory_space<vmem>>, %arg6: memref<32x1xf32, #tpu.memory_space<vmem>>, %arg7: memref<32x1xf32, #tpu.memory_space<vmem>>, %arg8: memref<32x32xf32, #tpu.memory_space<vmem>>, %arg9: memref<32x1xf32, #tpu.memory_space<vmem>>, %arg10: memref<32x32xf32, #tpu.memory_space<vmem>>, %arg11: memref<32x1xf32, #tpu.memory_space<vmem>>, %arg12: memref<3x32xf32, #tpu.memory_space<vmem>>, %arg13: memref<3x1xf32, #tpu.memory_space<vmem>>, %arg14: memref<3x128xf32, #tpu.memory_space<vmem>>) attributes {dimension_semantics = [#tpu.dimension_semantics<parallel>], iteration_bounds = array<i64: 1>, scalar_prefetch = 0 : i64, scratch_operands = 0 : i64, tpu.core_type = #tpu.core_type<tc>, window_params = [{transform_indices = @transform_0, window_bounds = array<i64: 12, 128>}, {transform_indices = @transform_1, window_bounds = array<i64: 3, 128>}, {transform_indices = @transform_2, window_bounds = array<i64: 1, 128>}, {pipeline_mode = #tpu.pipeline_mode<synchronous>, transform_indices = @transform_3, window_bounds = array<i64: 32, 12>}, {pipeline_mode = #tpu.pipeline_mode<synchronous>, transform_indices = @transform_4, window_bounds = array<i64: 32, 3>}, {pipeline_mode = #tpu.pipeline_mode<synchronous>, transform_indices = @transform_5, window_bounds = array<i64: 32, 1>}, {pipeline_mode = #tpu.pipeline_mode<synchronous>, transform_indices = @transform_6, window_bounds = array<i64: 32, 1>}, {pipeline_mode = #tpu.pipeline_mode<synchronous>, transform_indices = @transform_7, window_bounds = array<i64: 32, 32>}, {pipeline_mode = #tpu.pipeline_mode<synchronous>, transform_indices = @transform_8, window_bounds = array<i64: 32, 1>}, {pipeline_mode = #tpu.pipeline_mode<synchronous>, transform_indices = @transform_9, window_bounds = array<i64: 32, 32>}, {pipeline_mode = #tpu.pipeline_mode<synchronous>, transform_indices = @transform_10, window_bounds = array<i64: 32, 1>}, {pipeline_mode = #tpu.pipeline_mode<synchronous>, transform_indices = @transform_11, window_bounds = array<i64: 3, 32>}, {pipeline_mode = #tpu.pipeline_mode<synchronous>, transform_indices = @transform_12, window_bounds = array<i64: 3, 1>}, {transform_indices = @transform_13, window_bounds = array<i64: 3, 128>}]} {
    %c0 = arith.constant 0 : index
    %c0_0 = arith.constant 0 : index
    %0 = vector.load %arg4[%c0, %c0_0] : memref<32x12xf32, #tpu.memory_space<vmem>>, vector<32x12xf32>
    %c0_1 = arith.constant 0 : index
    %c0_2 = arith.constant 0 : index
    %1 = vector.load %arg1[%c0_1, %c0_2] : memref<12x128xf32, #tpu.memory_space<vmem>>, vector<12x128xf32>
    %cst = arith.constant dense<0.000000e+00> : vector<32x128xf32>
    %2 = tpu.matmul %0, %1, %cst {dimension_numbers = #tpu.dot_dimension_numbers<[1], [0], [0], [1], [0, 0, 1, 1], [], []>} : vector<32x12xf32>, vector<12x128xf32>, vector<32x128xf32> -> vector<32x128xf32>
    %c0_3 = arith.constant 0 : index
    %c0_4 = arith.constant 0 : index
    %3 = vector.load %arg5[%c0_3, %c0_4] : memref<32x3xf32, #tpu.memory_space<vmem>>, vector<32x3xf32>
    %c0_5 = arith.constant 0 : index
    %c0_6 = arith.constant 0 : index
    %4 = vector.load %arg2[%c0_5, %c0_6] : memref<3x128xf32, #tpu.memory_space<vmem>>, vector<3x128xf32>
    %cst_7 = arith.constant dense<0.000000e+00> : vector<32x128xf32>
    %5 = tpu.matmul %3, %4, %cst_7 {dimension_numbers = #tpu.dot_dimension_numbers<[1], [0], [0], [1], [0, 0, 1, 1], [], []>} : vector<32x3xf32>, vector<3x128xf32>, vector<32x128xf32> -> vector<32x128xf32>
    %6 = arith.addf %2, %5 : vector<32x128xf32>
    %c0_8 = arith.constant 0 : index
    %c0_9 = arith.constant 0 : index
    %7 = vector.load %arg6[%c0_8, %c0_9] : memref<32x1xf32, #tpu.memory_space<vmem>>, vector<32x1xf32>
    %c0_10 = arith.constant 0 : index
    %c0_11 = arith.constant 0 : index
    %8 = vector.load %arg3[%c0_10, %c0_11] : memref<1x128xf32, #tpu.memory_space<vmem>>, vector<1x128xf32>
    %9 = vector.broadcast %7 : vector<32x1xf32> to vector<32x128xf32>
    %10 = vector.broadcast %8 : vector<1x128xf32> to vector<32x128xf32>
    %11 = arith.mulf %9, %10 : vector<32x128xf32>
    %12 = arith.addf %6, %11 : vector<32x128xf32>
    %c0_12 = arith.constant 0 : index
    %c0_13 = arith.constant 0 : index
    %13 = vector.load %arg7[%c0_12, %c0_13] : memref<32x1xf32, #tpu.memory_space<vmem>>, vector<32x1xf32>
    %14 = vector.broadcast %13 : vector<32x1xf32> to vector<32x128xf32>
    %15 = arith.addf %12, %14 : vector<32x128xf32>
    %cst_14 = arith.constant 5.000000e-01 : f32
    %16 = vector.broadcast %cst_14 : f32 to vector<32x128xf32>
    %17 = arith.mulf %16, %15 : vector<32x128xf32>
    %cst_15 = arith.constant 0.707106769 : f32
    %18 = vector.broadcast %cst_15 : f32 to vector<32x128xf32>
    %19 = arith.mulf %15, %18 : vector<32x128xf32>
    %20 = math.erf %19 : vector<32x128xf32>
    %cst_16 = arith.constant 1.000000e+00 : f32
    %21 = vector.broadcast %cst_16 : f32 to vector<32x128xf32>
    %22 = arith.addf %21, %20 : vector<32x128xf32>
    %23 = arith.mulf %17, %22 : vector<32x128xf32>
    %c0_17 = arith.constant 0 : index
    %c0_18 = arith.constant 0 : index
    %24 = vector.load %arg8[%c0_17, %c0_18] : memref<32x32xf32, #tpu.memory_space<vmem>>, vector<32x32xf32>
    %cst_19 = arith.constant dense<0.000000e+00> : vector<32x128xf32>
    %25 = tpu.matmul %24, %23, %cst_19 {dimension_numbers = #tpu.dot_dimension_numbers<[1], [0], [0], [1], [0, 0, 1, 1], [], []>} : vector<32x32xf32>, vector<32x128xf32>, vector<32x128xf32> -> vector<32x128xf32>
    %c0_20 = arith.constant 0 : index
    %c0_21 = arith.constant 0 : index
    %26 = vector.load %arg9[%c0_20, %c0_21] : memref<32x1xf32, #tpu.memory_space<vmem>>, vector<32x1xf32>
    %27 = vector.broadcast %26 : vector<32x1xf32> to vector<32x128xf32>
    %28 = arith.addf %25, %27 : vector<32x128xf32>
    %cst_22 = arith.constant 5.000000e-01 : f32
    %29 = vector.broadcast %cst_22 : f32 to vector<32x128xf32>
    %30 = arith.mulf %29, %28 : vector<32x128xf32>
    %cst_23 = arith.constant 0.707106769 : f32
    %31 = vector.broadcast %cst_23 : f32 to vector<32x128xf32>
    %32 = arith.mulf %28, %31 : vector<32x128xf32>
    %33 = math.erf %32 : vector<32x128xf32>
    %cst_24 = arith.constant 1.000000e+00 : f32
    %34 = vector.broadcast %cst_24 : f32 to vector<32x128xf32>
    %35 = arith.addf %34, %33 : vector<32x128xf32>
    %36 = arith.mulf %30, %35 : vector<32x128xf32>
    %c0_25 = arith.constant 0 : index
    %c0_26 = arith.constant 0 : index
    %37 = vector.load %arg10[%c0_25, %c0_26] : memref<32x32xf32, #tpu.memory_space<vmem>>, vector<32x32xf32>
    %cst_27 = arith.constant dense<0.000000e+00> : vector<32x128xf32>
    %38 = tpu.matmul %37, %36, %cst_27 {dimension_numbers = #tpu.dot_dimension_numbers<[1], [0], [0], [1], [0, 0, 1, 1], [], []>} : vector<32x32xf32>, vector<32x128xf32>, vector<32x128xf32> -> vector<32x128xf32>
    %c0_28 = arith.constant 0 : index
    %c0_29 = arith.constant 0 : index
    %39 = vector.load %arg11[%c0_28, %c0_29] : memref<32x1xf32, #tpu.memory_space<vmem>>, vector<32x1xf32>
    %40 = vector.broadcast %39 : vector<32x1xf32> to vector<32x128xf32>
    %41 = arith.addf %38, %40 : vector<32x128xf32>
    %cst_30 = arith.constant 5.000000e-01 : f32
    %42 = vector.broadcast %cst_30 : f32 to vector<32x128xf32>
    %43 = arith.mulf %42, %41 : vector<32x128xf32>
    %cst_31 = arith.constant 0.707106769 : f32
    %44 = vector.broadcast %cst_31 : f32 to vector<32x128xf32>
    %45 = arith.mulf %41, %44 : vector<32x128xf32>
    %46 = math.erf %45 : vector<32x128xf32>
    %cst_32 = arith.constant 1.000000e+00 : f32
    %47 = vector.broadcast %cst_32 : f32 to vector<32x128xf32>
    %48 = arith.addf %47, %46 : vector<32x128xf32>
    %49 = arith.mulf %43, %48 : vector<32x128xf32>
    %c0_33 = arith.constant 0 : index
    %c0_34 = arith.constant 0 : index
    %50 = vector.load %arg12[%c0_33, %c0_34] : memref<3x32xf32, #tpu.memory_space<vmem>>, vector<3x32xf32>
    %cst_35 = arith.constant dense<0.000000e+00> : vector<3x128xf32>
    %51 = tpu.matmul %50, %49, %cst_35 {dimension_numbers = #tpu.dot_dimension_numbers<[1], [0], [0], [1], [0, 0, 1, 1], [], []>} : vector<3x32xf32>, vector<32x128xf32>, vector<3x128xf32> -> vector<3x128xf32>
    %c0_36 = arith.constant 0 : index
    %c0_37 = arith.constant 0 : index
    %52 = vector.load %arg13[%c0_36, %c0_37] : memref<3x1xf32, #tpu.memory_space<vmem>>, vector<3x1xf32>
    %53 = vector.broadcast %52 : vector<3x1xf32> to vector<3x128xf32>
    %54 = arith.addf %51, %53 : vector<3x128xf32>
    %c0_38 = arith.constant 0 : index
    %c0_39 = arith.constant 0 : index
    %55 = vector.load %arg14[%c0_38, %c0_39] : memref<3x128xf32, #tpu.memory_space<vmem>>, vector<3x128xf32>
    tpu.vector_store %arg14[%c0_38, %c0_39], %54 {strides = array<i32>} : memref<3x128xf32, #tpu.memory_space<vmem>>, vector<3x128xf32>,
    return
  }
  func.func @transform_0(%arg0: i32) -> (i32, i32) {
    %c0_i32 = arith.constant 0 : i32
    %c0_i32_0 = arith.constant 0 : i32
    return %c0_i32, %arg0 : i32, i32
  }
  func.func @transform_1(%arg0: i32) -> (i32, i32) {
    %c0_i32 = arith.constant 0 : i32
    %c0_i32_0 = arith.constant 0 : i32
    return %c0_i32, %arg0 : i32, i32
  }
  func.func @transform_2(%arg0: i32) -> (i32, i32) {
    %c0_i32 = arith.constant 0 : i32
    %c0_i32_0 = arith.constant 0 : i32
    return %c0_i32, %arg0 : i32, i32
  }
  func.func @transform_3(%arg0: i32) -> (i32, i32) {
    %c0_i32 = arith.constant 0 : i32
    %c0_i32_0 = arith.constant 0 : i32
    %c0_i32_1 = arith.constant 0 : i32
    return %c0_i32, %c0_i32_0 : i32, i32
  }
  func.func @transform_4(%arg0: i32) -> (i32, i32) {
    %c0_i32 = arith.constant 0 : i32
    %c0_i32_0 = arith.constant 0 : i32
    %c0_i32_1 = arith.constant 0 : i32
    return %c0_i32, %c0_i32_0 : i32, i32
  }
  func.func @transform_5(%arg0: i32) -> (i32, i32) {
    %c0_i32 = arith.constant 0 : i32
    %c0_i32_0 = arith.constant 0 : i32
    %c0_i32_1 = arith.constant 0 : i32
    return %c0_i32, %c0_i32_0 : i32, i32
  }
  func.func @transform_6(%arg0: i32) -> (i32, i32) {
    %c0_i32 = arith.constant 0 : i32
    %c0_i32_0 = arith.constant 0 : i32
    %c0_i32_1 = arith.constant 0 : i32
    return %c0_i32, %c0_i32_0 : i32, i32
  }
  func.func @transform_7(%arg0: i32) -> (i32, i32) {
    %c0_i32 = arith.constant 0 : i32
    %c0_i32_0 = arith.constant 0 : i32
    %c0_i32_1 = arith.constant 0 : i32
    return %c0_i32, %c0_i32_0 : i32, i32
  }
  func.func @transform_8(%arg0: i32) -> (i32, i32) {
    %c0_i32 = arith.constant 0 : i32
    %c0_i32_0 = arith.constant 0 : i32
    %c0_i32_1 = arith.constant 0 : i32
    return %c0_i32, %c0_i32_0 : i32, i32
  }
  func.func @transform_9(%arg0: i32) -> (i32, i32) {
    %c0_i32 = arith.constant 0 : i32
    %c0_i32_0 = arith.constant 0 : i32
    %c0_i32_1 = arith.constant 0 : i32
    return %c0_i32, %c0_i32_0 : i32, i32
  }
  func.func @transform_10(%arg0: i32) -> (i32, i32) {
    %c0_i32 = arith.constant 0 : i32
    %c0_i32_0 = arith.constant 0 : i32
    %c0_i32_1 = arith.constant 0 : i32
    return %c0_i32, %c0_i32_0 : i32, i32
  }
  func.func @transform_11(%arg0: i32) -> (i32, i32) {
    %c0_i32 = arith.constant 0 : i32
    %c0_i32_0 = arith.constant 0 : i32
    %c0_i32_1 = arith.constant 0 : i32
    return %c0_i32, %c0_i32_0 : i32, i32
  }
  func.func @transform_12(%arg0: i32) -> (i32, i32) {
    %c0_i32 = arith.constant 0 : i32
    %c0_i32_0 = arith.constant 0 : i32
    %c0_i32_1 = arith.constant 0 : i32
    return %c0_i32, %c0_i32_0 : i32, i32
  }
  func.func @transform_13(%arg0: i32) -> (i32, i32) {
    %c0_i32 = arith.constant 0 : i32
    %c0_i32_0 = arith.constant 0 : i32
    return %c0_i32, %arg0 : i32, i32
  }
}

</mosaic_0001>

<llo_original>
// kernel: actor_vector_field_forward.1
$region0: #{actor_vector_field_forward.1}
  #allocation0 [shape = 'u32[]', space=smem, size = 0x4, offset = 0x4, fixed_abs, tag = 'smem constant byte address 0x4 - core index']
  #allocation1 [shape = 'u32[144,128]{1,0:T(1,128)}', space=vmem, size = 0x12000, scoped, tag = 'internal scratch']
  %s0 = inlined_call_operand.vmem [shape: f32[12,128], index: 0, kind: input, shape index: {}]
  %s1 = inlined_call_operand.vmem [shape: f32[3,128], index: 1, kind: input, shape index: {}]
  %s2 = inlined_call_operand.vmem [shape: f32[1,128], index: 2, kind: input, shape index: {}]
  %s3 = inlined_call_operand.vmem [shape: f32[32,12], index: 3, kind: input, shape index: {}]
  %s4 = inlined_call_operand.vmem [shape: f32[32,3], index: 4, kind: input, shape index: {}]
  %s5 = inlined_call_operand.vmem [shape: f32[32,1], index: 5, kind: input, shape index: {}]
  %s6 = inlined_call_operand.vmem [shape: f32[32,1], index: 6, kind: input, shape index: {}]
  %s7 = inlined_call_operand.vmem [shape: f32[32,32], index: 7, kind: input, shape index: {}]
  %s8 = inlined_call_operand.vmem [shape: f32[32,1], index: 8, kind: input, shape index: {}]
  %s9 = inlined_call_operand.vmem [shape: f32[32,32], index: 9, kind: input, shape index: {}]
  %s10 = inlined_call_operand.vmem [shape: f32[32,1], index: 10, kind: input, shape index: {}]
  %s11 = inlined_call_operand.vmem [shape: f32[3,32], index: 11, kind: input, shape index: {}]
  %s12 = inlined_call_operand.vmem [shape: f32[3,1], index: 12, kind: input, shape index: {}]
  %s13 = inlined_call_operand.vmem [shape: f32[3,128], index: 13, kind: output, shape index: {}]
  %s14 = sld [smem:[#allocation0]]
  $region62: #{actor_vector_field_forward.1} parent=0
    _
  %s16 = ssub.s32 1, %s14
  %s17 = scalar_select 0, %s16, %s14
  // Predicated region
  $region2: #{actor_vector_field_forward.1} parent=0 // pred_check
    _
  $region3: #{actor_vector_field_forward.1} parent=0 // pred_check_branch
    %19 = sbr.rel (0) target = $region5
  $region4: #{actor_vector_field_forward.1} parent=0 // pred_region
    _
  $region5: #{actor_vector_field_forward.1} parent=0 // pred_fallthru
    _
  // Predicated region
  $region6: #{actor_vector_field_forward.1} parent=0 // pred_check
    _
  $region7: #{actor_vector_field_forward.1} parent=0 // pred_check_branch
    %21 = sbr.rel (0) target = $region9
  $region8: #{actor_vector_field_forward.1} parent=0 // pred_region
    _
  $region9: #{actor_vector_field_forward.1} parent=0 // pred_fallthru
    _
  // Predicated region
  $region10: #{actor_vector_field_forward.1} parent=0 // pred_check
    _
  $region11: #{actor_vector_field_forward.1} parent=0 // pred_check_branch
    %23 = sbr.rel (0) target = $region13
  $region12: #{actor_vector_field_forward.1} parent=0 // pred_region
    _
  $region13: #{actor_vector_field_forward.1} parent=0 // pred_fallthru
    _
  // Predicated region
  $region14: #{actor_vector_field_forward.1} parent=0 // pred_check
    _
  $region15: #{actor_vector_field_forward.1} parent=0 // pred_check_branch
    %25 = sbr.rel (0) target = $region17
  $region16: #{actor_vector_field_forward.1} parent=0 // pred_region
    _
  $region17: #{actor_vector_field_forward.1} parent=0 // pred_fallthru
    _
  // Predicated region
  $region18: #{actor_vector_field_forward.1} parent=0 // pred_check
    _
  $region19: #{actor_vector_field_forward.1} parent=0 // pred_check_branch
    %27 = sbr.rel (0) target = $region21
  $region20: #{actor_vector_field_forward.1} parent=0 // pred_region
    _
  $region21: #{actor_vector_field_forward.1} parent=0 // pred_fallthru
    _
  // Predicated region
  $region22: #{actor_vector_field_forward.1} parent=0 // pred_check
    _
  $region23: #{actor_vector_field_forward.1} parent=0 // pred_check_branch
    %29 = sbr.rel (0) target = $region25
  $region24: #{actor_vector_field_forward.1} parent=0 // pred_region
    _
  $region25: #{actor_vector_field_forward.1} parent=0 // pred_fallthru
    _
  // Predicated region
  $region26: #{actor_vector_field_forward.1} parent=0 // pred_check
    _
  $region27: #{actor_vector_field_forward.1} parent=0 // pred_check_branch
    %31 = sbr.rel (0) target = $region29
  $region28: #{actor_vector_field_forward.1} parent=0 // pred_region
    _
  $region29: #{actor_vector_field_forward.1} parent=0 // pred_fallthru
    _
  // Predicated region
  $region30: #{actor_vector_field_forward.1} parent=0 // pred_check
    _
  $region31: #{actor_vector_field_forward.1} parent=0 // pred_check_branch
    %33 = sbr.rel (0) target = $region33
  $region32: #{actor_vector_field_forward.1} parent=0 // pred_region
    _
  $region33: #{actor_vector_field_forward.1} parent=0 // pred_fallthru
    _
  // Predicated region
  $region34: #{actor_vector_field_forward.1} parent=0 // pred_check
    _
  $region35: #{actor_vector_field_forward.1} parent=0 // pred_check_branch
    %35 = sbr.rel (0) target = $region37
  $region36: #{actor_vector_field_forward.1} parent=0 // pred_region
    _
  $region37: #{actor_vector_field_forward.1} parent=0 // pred_fallthru
    _
  // Predicated region
  $region38: #{actor_vector_field_forward.1} parent=0 // pred_check
    _
  $region39: #{actor_vector_field_forward.1} parent=0 // pred_check_branch
    %37 = sbr.rel (0) target = $region41
  $region40: #{actor_vector_field_forward.1} parent=0 // pred_region
    _
  $region41: #{actor_vector_field_forward.1} parent=0 // pred_fallthru
    _
  // Predicated region
  $region42: #{actor_vector_field_forward.1} parent=0 // pred_check
    _
  $region43: #{actor_vector_field_forward.1} parent=0 // pred_check_branch
    %39 = sbr.rel (0) target = $region45
  $region44: #{actor_vector_field_forward.1} parent=0 // pred_region
    _
  $region45: #{actor_vector_field_forward.1} parent=0 // pred_fallthru
    _
  // Predicated region
  $region46: #{actor_vector_field_forward.1} parent=0 // pred_check
    _
  $region47: #{actor_vector_field_forward.1} parent=0 // pred_check_branch
    %41 = sbr.rel (0) target = $region49
  $region48: #{actor_vector_field_forward.1} parent=0 // pred_region
    _
  $region49: #{actor_vector_field_forward.1} parent=0 // pred_fallthru
    _
  // Predicated region
  $region50: #{actor_vector_field_forward.1} parent=0 // pred_check
    _
  $region51: #{actor_vector_field_forward.1} parent=0 // pred_check_branch
    %43 = sbr.rel (0) target = $region53
  $region52: #{actor_vector_field_forward.1} parent=0 // pred_region
    _
  $region53: #{actor_vector_field_forward.1} parent=0 // pred_fallthru
    _
  %v44 = vld [vmem:[%s3] sm:$0xff]
  %v45 = vld [vmem:[%s3 + $0x8] sm:$0xff]
  %v46 = vld [vmem:[%s3 + $0x10] sm:$0xff]
  %v47 = vld [vmem:[%s3 + $0x18] sm:$0xff]
  %v48 = vld [vmem:[%s0] sm:$0xff]
  %v49 = vld [vmem:[%s0 + $0x8] sm:$0xf]
  %v50 = vld [vmem:[%s4] sm:$0xff]
  %v51 = vld [vmem:[%s4 + $0x8] sm:$0xff]
  %v52 = vld [vmem:[%s4 + $0x10] sm:$0xff]
  %v53 = vld [vmem:[%s4 + $0x18] sm:$0xff]
  %v54 = vld [vmem:[%s1] sm:$0x7]
  %vm55 = vcmask 23552
  %v57 = vsel %vm55, %v50, 0
  %v60 = vsel %vm55, %v51, 0
  %v63 = vsel %vm55, %v52, 0
  %v66 = vsel %vm55, %v53, 0
  %vm68 = vcmask 1042432
  %v70 = vsel %vm68, %v54, 0
  %72 = vmatprep.subr.mxu0 0.0
  %73 = vmatpush1.msra.mxu0 0.0
  %74 = vmatprep.subr.mxu0 0.0
  %75 = vmatpush1.msra.mxu0 0.0
  %76 = vmatprep.subr.mxu0 0.0
  %77 = vmatpush1.msra.mxu0 0.0
  %78 = vmatprep.subr.mxu0 0.0
  %79 = vmatpush1.msra.mxu0 0.0
  %80 = vmatprep.subr.mxu0 0.0
  %81 = vmatpush1.msra.mxu0 0.0
  %82 = vmatprep.subr.mxu0 0.0
  %83 = vmatpush1.msra.mxu0 0.0
  %84 = vmatprep.subr.mxu0 0.0
  %85 = vmatpush1.msra.mxu0 0.0
  %86 = vmatprep.subr.mxu0 0.0
  %87 = vmatpush1.msra.mxu0 0.0
  %88 = vmatprep.subr.mxu0 0.0
  %89 = vmatpush1.msra.mxu0 0.0
  %90 = vmatprep.subr.mxu0 0.0
  %91 = vmatpush1.msra.mxu0 0.0
  %92 = vmatprep.subr.mxu0 0.0
  %93 = vmatpush1.msra.mxu0 0.0
  %94 = vmatprep.subr.mxu0 0.0
  %95 = vmatpush1.msra.mxu0 0.0
  %96 = vmatprep.subr.mxu0 0.0
  %97 = vmatpush1.msra.mxu0 0.0
  %98 = vmatprep.subr.mxu0 0.0
  %99 = vmatpush1.msra.mxu0 0.0
  %100 = vmatprep.subr.mxu0 0.0
  %101 = vmatpush1.msra.mxu0 0.0
  %102 = vmatprep.subr.mxu0 0.0
  %103 = vmatpush1.msra.mxu0 %v70
  %104 = vmatprep.subr.mxu0 0.0
  %105 = vmatpush2.msra.mxu0 0.0
  %106 = vmatprep.subr.mxu0 0.0
  %107 = vmatpush2.msra.mxu0 0.0
  %108 = vmatprep.subr.mxu0 0.0
  %109 = vmatpush2.msra.mxu0 0.0
  %110 = vmatprep.subr.mxu0 0.0
  %111 = vmatpush2.msra.mxu0 0.0
  %112 = vmatprep.subr.mxu0 0.0
  %113 = vmatpush2.msra.mxu0 0.0
  %114 = vmatprep.subr.mxu0 0.0
  %115 = vmatpush2.msra.mxu0 0.0
  %116 = vmatprep.subr.mxu0 0.0
  %117 = vmatpush2.msra.mxu0 0.0
  %118 = vmatprep.subr.mxu0 0.0
  %119 = vmatpush2.msra.mxu0 0.0
  %120 = vmatprep.subr.mxu0 0.0
  %121 = vmatpush2.msra.mxu0 0.0
  %122 = vmatprep.subr.mxu0 0.0
  %123 = vmatpush2.msra.mxu0 0.0
  %124 = vmatprep.subr.mxu0 0.0
  %125 = vmatpush2.msra.mxu0 0.0
  %126 = vmatprep.subr.mxu0 0.0
  %127 = vmatpush2.msra.mxu0 0.0
  %128 = vmatprep.subr.mxu0 0.0
  %129 = vmatpush2.msra.mxu0 0.0
  %130 = vmatprep.subr.mxu0 0.0
  %131 = vmatpush2.msra.mxu0 0.0
  %132 = vmatprep.subr.mxu0 0.0
  %133 = vmatpush2.msra.mxu0 0.0
  %134 = vmatprep.subr.mxu0 0.0
  %135 = vmatpush2.msra.mxu0 0.0
  %136 = vmatprep.mubr.f32.mxu0 0.0
  %137 = vmatmul.mubr.f32.gmra.mxu0 %v57
  %v138 = vpop.f32.mrf.mxu0
  %v139 = vadd.f32 0.0, %v138
  %v140 = vpop.f32.mrf.mxu0
  %141 = vmatprep.mubr.f32.mxu0 0.0
  %142 = vmatmul.mubr.f32.gmra.mxu0 %v60
  %v143 = vpop.f32.mrf.mxu0
  %v144 = vadd.f32 0.0, %v143
  %v145 = vpop.f32.mrf.mxu0
  %146 = vmatprep.mubr.f32.mxu0 0.0
  %147 = vmatmul.mubr.f32.gmra.mxu0 %v63
  %v148 = vpop.f32.mrf.mxu0
  %v149 = vadd.f32 0.0, %v148
  %v150 = vpop.f32.mrf.mxu0
  %151 = vmatprep.mubr.f32.mxu0 0.0
  %152 = vmatmul.mubr.f32.gmra.mxu0 %v66
  %v153 = vpop.f32.mrf.mxu0
  %v154 = vadd.f32 0.0, %v153
  %v155 = vpop.f32.mrf.mxu0
  %156 = vdwg.mxu0
  %vm157 = vcmask 97280
  %v159 = vsel %vm157, %v44, 0
  %v162 = vsel %vm157, %v45, 0
  %v165 = vsel %vm157, %v46, 0
  %v168 = vsel %vm157, %v47, 0
  %vm170 = vcmask 1043456
  %v172 = vsel %vm170, %v49, 0
  %174 = vmatprep.subr.mxu0 0.0
  %175 = vmatpush1.msra.mxu0 0.0
  %176 = vmatprep.subr.mxu0 0.0
  %177 = vmatpush1.msra.mxu0 0.0
  %178 = vmatprep.subr.mxu0 0.0
  %179 = vmatpush1.msra.mxu0 0.0
  %180 = vmatprep.subr.mxu0 0.0
  %181 = vmatpush1.msra.mxu0 0.0
  %182 = vmatprep.subr.mxu0 0.0
  %183 = vmatpush1.msra.mxu0 0.0
  %184 = vmatprep.subr.mxu0 0.0
  %185 = vmatpush1.msra.mxu0 0.0
  %186 = vmatprep.subr.mxu0 0.0
  %187 = vmatpush1.msra.mxu0 0.0
  %188 = vmatprep.subr.mxu0 0.0
  %189 = vmatpush1.msra.mxu0 0.0
  %190 = vmatprep.subr.mxu0 0.0
  %191 = vmatpush1.msra.mxu0 0.0
  %192 = vmatprep.subr.mxu0 0.0
  %193 = vmatpush1.msra.mxu0 0.0
  %194 = vmatprep.subr.mxu0 0.0
  %195 = vmatpush1.msra.mxu0 0.0
  %196 = vmatprep.subr.mxu0 0.0
  %197 = vmatpush1.msra.mxu0 0.0
  %198 = vmatprep.subr.mxu0 0.0
  %199 = vmatpush1.msra.mxu0 0.0
  %200 = vmatprep.subr.mxu0 0.0
  %201 = vmatpush1.msra.mxu0 0.0
  %202 = vmatprep.subr.mxu0 0.0
  %203 = vmatpush1.msra.mxu0 %v172
  %204 = vmatprep.subr.mxu0 0.0
  %205 = vmatpush1.msra.mxu0 %v48
  %206 = vmatprep.subr.mxu0 0.0
  %207 = vmatpush2.msra.mxu0 0.0
  %208 = vmatprep.subr.mxu0 0.0
  %209 = vmatpush2.msra.mxu0 0.0
  %210 = vmatprep.subr.mxu0 0.0
  %211 = vmatpush2.msra.mxu0 0.0
  %212 = vmatprep.subr.mxu0 0.0
  %213 = vmatpush2.msra.mxu0 0.0
  %214 = vmatprep.subr.mxu0 0.0
  %215 = vmatpush2.msra.mxu0 0.0
  %216 = vmatprep.subr.mxu0 0.0
  %217 = vmatpush2.msra.mxu0 0.0
  %218 = vmatprep.subr.mxu0 0.0
  %219 = vmatpush2.msra.mxu0 0.0
  %220 = vmatprep.subr.mxu0 0.0
  %221 = vmatpush2.msra.mxu0 0.0
  %222 = vmatprep.subr.mxu0 0.0
  %223 = vmatpush2.msra.mxu0 0.0
  %224 = vmatprep.subr.mxu0 0.0
  %225 = vmatpush2.msra.mxu0 0.0
  %226 = vmatprep.subr.mxu0 0.0
  %227 = vmatpush2.msra.mxu0 0.0
  %228 = vmatprep.subr.mxu0 0.0
  %229 = vmatpush2.msra.mxu0 0.0
  %230 = vmatprep.subr.mxu0 0.0
  %231 = vmatpush2.msra.mxu0 0.0
  %232 = vmatprep.subr.mxu0 0.0
  %233 = vmatpush2.msra.mxu0 0.0
  %234 = vmatprep.subr.mxu0 0.0
  %235 = vmatpush2.msra.mxu0 0.0
  %236 = vmatprep.subr.mxu0 0.0
  %237 = vmatpush2.msra.mxu0 0.0
  %238 = vmatprep.mubr.f32.mxu0 0.0
  %239 = vmatmul.mubr.f32.gmra.mxu0 %v159
  %v240 = vpop.f32.mrf.mxu0
  %v241 = vadd.f32 %v139, %v240
  %v242 = vpop.f32.mrf.mxu0
  %243 = vmatprep.mubr.f32.mxu0 0.0
  %244 = vmatmul.mubr.f32.gmra.mxu0 %v162
  %v245 = vpop.f32.mrf.mxu0
  %v246 = vadd.f32 %v144, %v245
  %v247 = vpop.f32.mrf.mxu0
  %248 = vmatprep.mubr.f32.mxu0 0.0
  %249 = vmatmul.mubr.f32.gmra.mxu0 %v165
  %v250 = vpop.f32.mrf.mxu0
  %v251 = vadd.f32 %v149, %v250
  %v252 = vpop.f32.mrf.mxu0
  %253 = vmatprep.mubr.f32.mxu0 0.0
  %254 = vmatmul.mubr.f32.gmra.mxu0 %v168
  %v255 = vpop.f32.mrf.mxu0
  %v256 = vadd.f32 %v154, %v255
  %v257 = vpop.f32.mrf.mxu0
  %258 = vdwg.mxu0
  %v259 = vld [vmem:[%s5] sm:$0xff]
  %v260 = vld [vmem:[%s5 + $0x8] sm:$0xff]
  %v261 = vld [vmem:[%s5 + $0x10] sm:$0xff]
  %v262 = vld [vmem:[%s5 + $0x18] sm:$0xff]
  %v263 = vld [vmem:[%s2] sm:$0x1]
  %265 = vset.pattern.permute.xlu0 0
  %266 = vperm.xlu0 %265, %v259
  %v267 = vpop.permute.xlu0 %266
  %270 = vset.pattern.permute.xlu0 0
  %271 = vperm.xlu0 %270, %v260
  %v272 = vpop.permute.xlu0 %271
  %275 = vset.pattern.permute.xlu0 0
  %276 = vperm.xlu0 %275, %v261
  %v277 = vpop.permute.xlu0 %276
  %280 = vset.pattern.permute.xlu0 0
  %281 = vperm.xlu0 %280, %v262
  %v282 = vpop.permute.xlu0 %281
  %v285 = vlaneseq
  %v286 = vshrl.u32 %v285, 7
  %v287 = vsub.s32 0, %v286
  %v288 = vrot.slane %v263, %v287
  %v290 = vmul.f32 %v267, %v288
  %v291 = vmul.f32 %v272, %v288
  %v292 = vmul.f32 %v277, %v288
  %v293 = vmul.f32 %v282, %v288
  %v294 = vadd.f32 %v241, %v290
  %v295 = vadd.f32 %v246, %v291
  %v296 = vadd.f32 %v251, %v292
  %v297 = vadd.f32 %v256, %v293
  %v298 = vld [vmem:[%s6] sm:$0xff]
  %v299 = vld [vmem:[%s6 + $0x8] sm:$0xff]
  %v300 = vld [vmem:[%s6 + $0x10] sm:$0xff]
  %v301 = vld [vmem:[%s6 + $0x18] sm:$0xff]
  %303 = vset.pattern.permute.xlu0 0
  %304 = vperm.xlu0 %303, %v298
  %v305 = vpop.permute.xlu0 %304
  %308 = vset.pattern.permute.xlu0 0
  %309 = vperm.xlu0 %308, %v299
  %v310 = vpop.permute.xlu0 %309
  %313 = vset.pattern.permute.xlu0 0
  %314 = vperm.xlu0 %313, %v300
  %v315 = vpop.permute.xlu0 %314
  %318 = vset.pattern.permute.xlu0 0
  %319 = vperm.xlu0 %318, %v301
  %v320 = vpop.permute.xlu0 %319
  %v322 = vadd.f32 %v294, %v305
  %v323 = vadd.f32 %v295, %v310
  %v324 = vadd.f32 %v296, %v315
  %v325 = vadd.f32 %v297, %v320
  %v326 = vmul.f32 %v322, 0.5
  %v327 = vmul.f32 %v323, 0.5
  %v328 = vmul.f32 %v324, 0.5
  %v329 = vmul.f32 %v325, 0.5
  %v330 = vmul.f32 %v322, 0.70710677
  %v331 = vmul.f32 %v323, 0.70710677
  %v332 = vmul.f32 %v324, 0.70710677
  %v333 = vmul.f32 %v325, 0.70710677
  %v334 = verf.f32.pop %v330
  %v335 = verf.f32.pop %v331
  %v336 = verf.f32.pop %v332
  %v337 = verf.f32.pop %v333
  %v338 = vadd.f32 %v334, 1.0
  %v339 = vadd.f32 %v335, 1.0
  %v340 = vadd.f32 %v336, 1.0
  %v341 = vadd.f32 %v337, 1.0
  %v342 = vmul.f32 %v326, %v338
  %v343 = vmul.f32 %v327, %v339
  %v344 = vmul.f32 %v328, %v340
  %v345 = vmul.f32 %v329, %v341
  %v346 = vld [vmem:[%s7] sm:$0xff]
  %v347 = vld [vmem:[%s7 + $0x8] sm:$0xff]
  %v348 = vld [vmem:[%s7 + $0x10] sm:$0xff]
  %v349 = vld [vmem:[%s7 + $0x18] sm:$0xff]
  %v350 = vld [vmem:[%s8] sm:$0xff]
  %v351 = vld [vmem:[%s8 + $0x8] sm:$0xff]
  %v352 = vld [vmem:[%s8 + $0x10] sm:$0xff]
  %v353 = vld [vmem:[%s8 + $0x18] sm:$0xff]
  %355 = vset.pattern.permute.xlu0 0
  %356 = vperm.xlu0 %355, %v350
  %v357 = vpop.permute.xlu0 %356
  %360 = vset.pattern.permute.xlu0 0
  %361 = vperm.xlu0 %360, %v351
  %v362 = vpop.permute.xlu0 %361
  %365 = vset.pattern.permute.xlu0 0
  %366 = vperm.xlu0 %365, %v352
  %v367 = vpop.permute.xlu0 %366
  %370 = vset.pattern.permute.xlu0 0
  %371 = vperm.xlu0 %370, %v353
  %v372 = vpop.permute.xlu0 %371
  %vm374 = vcmask 261120
  %v376 = vsel %vm374, %v346, 0
  %v379 = vsel %vm374, %v347, 0
  %v382 = vsel %vm374, %v348, 0
  %v385 = vsel %vm374, %v349, 0
  %387 = vmatprep.subr.mxu0 0.0
  %388 = vmatpush1.msra.mxu0 0.0
  %389 = vmatprep.subr.mxu0 0.0
  %390 = vmatpush1.msra.mxu0 0.0
  %391 = vmatprep.subr.mxu0 0.0
  %392 = vmatpush1.msra.mxu0 0.0
  %393 = vmatprep.subr.mxu0 0.0
  %394 = vmatpush1.msra.mxu0 0.0
  %395 = vmatprep.subr.mxu0 0.0
  %396 = vmatpush1.msra.mxu0 0.0
  %397 = vmatprep.subr.mxu0 0.0
  %398 = vmatpush1.msra.mxu0 0.0
  %399 = vmatprep.subr.mxu0 0.0
  %400 = vmatpush1.msra.mxu0 0.0
  %401 = vmatprep.subr.mxu0 0.0
  %402 = vmatpush1.msra.mxu0 0.0
  %403 = vmatprep.subr.mxu0 0.0
  %404 = vmatpush1.msra.mxu0 0.0
  %405 = vmatprep.subr.mxu0 0.0
  %406 = vmatpush1.msra.mxu0 0.0
  %407 = vmatprep.subr.mxu0 0.0
  %408 = vmatpush1.msra.mxu0 0.0
  %409 = vmatprep.subr.mxu0 0.0
  %410 = vmatpush1.msra.mxu0 0.0
  %411 = vmatprep.subr.mxu0 0.0
  %412 = vmatpush1.msra.mxu0 %v345
  %413 = vmatprep.subr.mxu0 0.0
  %414 = vmatpush1.msra.mxu0 %v344
  %415 = vmatprep.subr.mxu0 0.0
  %416 = vmatpush1.msra.mxu0 %v343
  %417 = vmatprep.subr.mxu0 0.0
  %418 = vmatpush1.msra.mxu0 %v342
  %419 = vmatprep.subr.mxu0 0.0
  %420 = vmatpush2.msra.mxu0 0.0
  %421 = vmatprep.subr.mxu0 0.0
  %422 = vmatpush2.msra.mxu0 0.0
  %423 = vmatprep.subr.mxu0 0.0
  %424 = vmatpush2.msra.mxu0 0.0
  %425 = vmatprep.subr.mxu0 0.0
  %426 = vmatpush2.msra.mxu0 0.0
  %427 = vmatprep.subr.mxu0 0.0
  %428 = vmatpush2.msra.mxu0 0.0
  %429 = vmatprep.subr.mxu0 0.0
  %430 = vmatpush2.msra.mxu0 0.0
  %431 = vmatprep.subr.mxu0 0.0
  %432 = vmatpush2.msra.mxu0 0.0
  %433 = vmatprep.subr.mxu0 0.0
  %434 = vmatpush2.msra.mxu0 0.0
  %435 = vmatprep.subr.mxu0 0.0
  %436 = vmatpush2.msra.mxu0 0.0
  %437 = vmatprep.subr.mxu0 0.0
  %438 = vmatpush2.msra.mxu0 0.0
  %439 = vmatprep.subr.mxu0 0.0
  %440 = vmatpush2.msra.mxu0 0.0
  %441 = vmatprep.subr.mxu0 0.0
  %442 = vmatpush2.msra.mxu0 0.0
  %443 = vmatprep.subr.mxu0 0.0
  %444 = vmatpush2.msra.mxu0 0.0
  %445 = vmatprep.subr.mxu0 0.0
  %446 = vmatpush2.msra.mxu0 0.0
  %447 = vmatprep.subr.mxu0 0.0
  %448 = vmatpush2.msra.mxu0 0.0
  %449 = vmatprep.subr.mxu0 0.0
  %450 = vmatpush2.msra.mxu0 0.0
  %451 = vmatprep.mubr.f32.mxu0 0.0
  %452 = vmatmul.mubr.f32.gmra.mxu0 %v376
  %v453 = vpop.f32.mrf.mxu0
  %v454 = vadd.f32 %v357, %v453
  %v455 = vpop.f32.mrf.mxu0
  %456 = vmatprep.mubr.f32.mxu0 0.0
  %457 = vmatmul.mubr.f32.gmra.mxu0 %v379
  %v458 = vpop.f32.mrf.mxu0
  %v459 = vadd.f32 %v362, %v458
  %v460 = vpop.f32.mrf.mxu0
  %461 = vmatprep.mubr.f32.mxu0 0.0
  %462 = vmatmul.mubr.f32.gmra.mxu0 %v382
  %v463 = vpop.f32.mrf.mxu0
  %v464 = vadd.f32 %v367, %v463
  %v465 = vpop.f32.mrf.mxu0
  %466 = vmatprep.mubr.f32.mxu0 0.0
  %467 = vmatmul.mubr.f32.gmra.mxu0 %v385
  %v468 = vpop.f32.mrf.mxu0
  %v469 = vadd.f32 %v372, %v468
  %v470 = vpop.f32.mrf.mxu0
  %471 = vdwg.mxu0
  %v472 = vmul.f32 %v454, 0.5
  %v473 = vmul.f32 %v459, 0.5
  %v474 = vmul.f32 %v464, 0.5
  %v475 = vmul.f32 %v469, 0.5
  %v476 = vmul.f32 %v454, 0.70710677
  %v477 = vmul.f32 %v459, 0.70710677
  %v478 = vmul.f32 %v464, 0.70710677
  %v479 = vmul.f32 %v469, 0.70710677
  %v480 = verf.f32.pop %v476
  %v481 = verf.f32.pop %v477
  %v482 = verf.f32.pop %v478
  %v483 = verf.f32.pop %v479
  %v484 = vadd.f32 %v480, 1.0
  %v485 = vadd.f32 %v481, 1.0
  %v486 = vadd.f32 %v482, 1.0
  %v487 = vadd.f32 %v483, 1.0
  %v488 = vmul.f32 %v472, %v484
  %v489 = vmul.f32 %v473, %v485
  %v490 = vmul.f32 %v474, %v486
  %v491 = vmul.f32 %v475, %v487
  %v492 = vld [vmem:[%s9] sm:$0xff]
  %v493 = vld [vmem:[%s9 + $0x8] sm:$0xff]
  %v494 = vld [vmem:[%s9 + $0x10] sm:$0xff]
  %v495 = vld [vmem:[%s9 + $0x18] sm:$0xff]
  %v496 = vld [vmem:[%s10] sm:$0xff]
  %v497 = vld [vmem:[%s10 + $0x8] sm:$0xff]
  %v498 = vld [vmem:[%s10 + $0x10] sm:$0xff]
  %v499 = vld [vmem:[%s10 + $0x18] sm:$0xff]
  %501 = vset.pattern.permute.xlu0 0
  %502 = vperm.xlu0 %501, %v496
  %v503 = vpop.permute.xlu0 %502
  %506 = vset.pattern.permute.xlu0 0
  %507 = vperm.xlu0 %506, %v497
  %v508 = vpop.permute.xlu0 %507
  %511 = vset.pattern.permute.xlu0 0
  %512 = vperm.xlu0 %511, %v498
  %v513 = vpop.permute.xlu0 %512
  %516 = vset.pattern.permute.xlu0 0
  %517 = vperm.xlu0 %516, %v499
  %v518 = vpop.permute.xlu0 %517
  %v521 = vsel %vm374, %v492, 0
  %v524 = vsel %vm374, %v493, 0
  %v527 = vsel %vm374, %v494, 0
  %v530 = vsel %vm374, %v495, 0
  %532 = vmatprep.subr.mxu0 0.0
  %533 = vmatpush1.msra.mxu0 0.0
  %534 = vmatprep.subr.mxu0 0.0
  %535 = vmatpush1.msra.mxu0 0.0
  %536 = vmatprep.subr.mxu0 0.0
  %537 = vmatpush1.msra.mxu0 0.0
  %538 = vmatprep.subr.mxu0 0.0
  %539 = vmatpush1.msra.mxu0 0.0
  %540 = vmatprep.subr.mxu0 0.0
  %541 = vmatpush1.msra.mxu0 0.0
  %542 = vmatprep.subr.mxu0 0.0
  %543 = vmatpush1.msra.mxu0 0.0
  %544 = vmatprep.subr.mxu0 0.0
  %545 = vmatpush1.msra.mxu0 0.0
  %546 = vmatprep.subr.mxu0 0.0
  %547 = vmatpush1.msra.mxu0 0.0
  %548 = vmatprep.subr.mxu0 0.0
  %549 = vmatpush1.msra.mxu0 0.0
  %550 = vmatprep.subr.mxu0 0.0
  %551 = vmatpush1.msra.mxu0 0.0
  %552 = vmatprep.subr.mxu0 0.0
  %553 = vmatpush1.msra.mxu0 0.0
  %554 = vmatprep.subr.mxu0 0.0
  %555 = vmatpush1.msra.mxu0 0.0
  %556 = vmatprep.subr.mxu0 0.0
  %557 = vmatpush1.msra.mxu0 %v491
  %558 = vmatprep.subr.mxu0 0.0
  %559 = vmatpush1.msra.mxu0 %v490
  %560 = vmatprep.subr.mxu0 0.0
  %561 = vmatpush1.msra.mxu0 %v489
  %562 = vmatprep.subr.mxu0 0.0
  %563 = vmatpush1.msra.mxu0 %v488
  %564 = vmatprep.subr.mxu0 0.0
  %565 = vmatpush2.msra.mxu0 0.0
  %566 = vmatprep.subr.mxu0 0.0
  %567 = vmatpush2.msra.mxu0 0.0
  %568 = vmatprep.subr.mxu0 0.0
  %569 = vmatpush2.msra.mxu0 0.0
  %570 = vmatprep.subr.mxu0 0.0
  %571 = vmatpush2.msra.mxu0 0.0
  %572 = vmatprep.subr.mxu0 0.0
  %573 = vmatpush2.msra.mxu0 0.0
  %574 = vmatprep.subr.mxu0 0.0
  %575 = vmatpush2.msra.mxu0 0.0
  %576 = vmatprep.subr.mxu0 0.0
  %577 = vmatpush2.msra.mxu0 0.0
  %578 = vmatprep.subr.mxu0 0.0
  %579 = vmatpush2.msra.mxu0 0.0
  %580 = vmatprep.subr.mxu0 0.0
  %581 = vmatpush2.msra.mxu0 0.0
  %582 = vmatprep.subr.mxu0 0.0
  %583 = vmatpush2.msra.mxu0 0.0
  %584 = vmatprep.subr.mxu0 0.0
  %585 = vmatpush2.msra.mxu0 0.0
  %586 = vmatprep.subr.mxu0 0.0
  %587 = vmatpush2.msra.mxu0 0.0
  %588 = vmatprep.subr.mxu0 0.0
  %589 = vmatpush2.msra.mxu0 0.0
  %590 = vmatprep.subr.mxu0 0.0
  %591 = vmatpush2.msra.mxu0 0.0
  %592 = vmatprep.subr.mxu0 0.0
  %593 = vmatpush2.msra.mxu0 0.0
  %594 = vmatprep.subr.mxu0 0.0
  %595 = vmatpush2.msra.mxu0 0.0
  %596 = vmatprep.mubr.f32.mxu0 0.0
  %597 = vmatmul.mubr.f32.gmra.mxu0 %v521
  %v598 = vpop.f32.mrf.mxu0
  %v599 = vadd.f32 %v503, %v598
  %v600 = vpop.f32.mrf.mxu0
  %601 = vmatprep.mubr.f32.mxu0 0.0
  %602 = vmatmul.mubr.f32.gmra.mxu0 %v524
  %v603 = vpop.f32.mrf.mxu0
  %v604 = vadd.f32 %v508, %v603
  %v605 = vpop.f32.mrf.mxu0
  %606 = vmatprep.mubr.f32.mxu0 0.0
  %607 = vmatmul.mubr.f32.gmra.mxu0 %v527
  %v608 = vpop.f32.mrf.mxu0
  %v609 = vadd.f32 %v513, %v608
  %v610 = vpop.f32.mrf.mxu0
  %611 = vmatprep.mubr.f32.mxu0 0.0
  %612 = vmatmul.mubr.f32.gmra.mxu0 %v530
  %v613 = vpop.f32.mrf.mxu0
  %v614 = vadd.f32 %v518, %v613
  %v615 = vpop.f32.mrf.mxu0
  %616 = vdwg.mxu0
  %v617 = vmul.f32 %v599, 0.5
  %v618 = vmul.f32 %v604, 0.5
  %v619 = vmul.f32 %v609, 0.5
  %v620 = vmul.f32 %v614, 0.5
  %v621 = vmul.f32 %v599, 0.70710677
  %v622 = vmul.f32 %v604, 0.70710677
  %v623 = vmul.f32 %v609, 0.70710677
  %v624 = vmul.f32 %v614, 0.70710677
  %v625 = verf.f32.pop %v621
  %v626 = verf.f32.pop %v622
  %v627 = verf.f32.pop %v623
  %v628 = verf.f32.pop %v624
  %v629 = vadd.f32 %v625, 1.0
  %v630 = vadd.f32 %v626, 1.0
  %v631 = vadd.f32 %v627, 1.0
  %v632 = vadd.f32 %v628, 1.0
  %v633 = vmul.f32 %v617, %v629
  %v634 = vmul.f32 %v618, %v630
  %v635 = vmul.f32 %v619, %v631
  %v636 = vmul.f32 %v620, %v632
  %v637 = vld [vmem:[%s11] sm:$0x7]
  %v638 = vld [vmem:[%s12] sm:$0x7]
  %640 = vset.pattern.permute.xlu0 0
  %641 = vperm.xlu0 %640, %v638
  %v642 = vpop.permute.xlu0 %641
  %v645 = vsel %vm374, %v637, 0
  %647 = vmatprep.subr.mxu0 0.0
  %648 = vmatpush1.msra.mxu0 0.0
  %649 = vmatprep.subr.mxu0 0.0
  %650 = vmatpush1.msra.mxu0 0.0
  %651 = vmatprep.subr.mxu0 0.0
  %652 = vmatpush1.msra.mxu0 0.0
  %653 = vmatprep.subr.mxu0 0.0
  %654 = vmatpush1.msra.mxu0 0.0
  %655 = vmatprep.subr.mxu0 0.0
  %656 = vmatpush1.msra.mxu0 0.0
  %657 = vmatprep.subr.mxu0 0.0
  %658 = vmatpush1.msra.mxu0 0.0
  %659 = vmatprep.subr.mxu0 0.0
  %660 = vmatpush1.msra.mxu0 0.0
  %661 = vmatprep.subr.mxu0 0.0
  %662 = vmatpush1.msra.mxu0 0.0
  %663 = vmatprep.subr.mxu0 0.0
  %664 = vmatpush1.msra.mxu0 0.0
  %665 = vmatprep.subr.mxu0 0.0
  %666 = vmatpush1.msra.mxu0 0.0
  %667 = vmatprep.subr.mxu0 0.0
  %668 = vmatpush1.msra.mxu0 0.0
  %669 = vmatprep.subr.mxu0 0.0
  %670 = vmatpush1.msra.mxu0 0.0
  %671 = vmatprep.subr.mxu0 0.0
  %672 = vmatpush1.msra.mxu0 %v636
  %673 = vmatprep.subr.mxu0 0.0
  %674 = vmatpush1.msra.mxu0 %v635
  %675 = vmatprep.subr.mxu0 0.0
  %676 = vmatpush1.msra.mxu0 %v634
  %677 = vmatprep.subr.mxu0 0.0
  %678 = vmatpush1.msra.mxu0 %v633
  %679 = vmatprep.subr.mxu0 0.0
  %680 = vmatpush2.msra.mxu0 0.0
  %681 = vmatprep.subr.mxu0 0.0
  %682 = vmatpush2.msra.mxu0 0.0
  %683 = vmatprep.subr.mxu0 0.0
  %684 = vmatpush2.msra.mxu0 0.0
  %685 = vmatprep.subr.mxu0 0.0
  %686 = vmatpush2.msra.mxu0 0.0
  %687 = vmatprep.subr.mxu0 0.0
  %688 = vmatpush2.msra.mxu0 0.0
  %689 = vmatprep.subr.mxu0 0.0
  %690 = vmatpush2.msra.mxu0 0.0
  %691 = vmatprep.subr.mxu0 0.0
  %692 = vmatpush2.msra.mxu0 0.0
  %693 = vmatprep.subr.mxu0 0.0
  %694 = vmatpush2.msra.mxu0 0.0
  %695 = vmatprep.subr.mxu0 0.0
  %696 = vmatpush2.msra.mxu0 0.0
  %697 = vmatprep.subr.mxu0 0.0
  %698 = vmatpush2.msra.mxu0 0.0
  %699 = vmatprep.subr.mxu0 0.0
  %700 = vmatpush2.msra.mxu0 0.0
  %701 = vmatprep.subr.mxu0 0.0
  %702 = vmatpush2.msra.mxu0 0.0
  %703 = vmatprep.subr.mxu0 0.0
  %704 = vmatpush2.msra.mxu0 0.0
  %705 = vmatprep.subr.mxu0 0.0
  %706 = vmatpush2.msra.mxu0 0.0
  %707 = vmatprep.subr.mxu0 0.0
  %708 = vmatpush2.msra.mxu0 0.0
  %709 = vmatprep.subr.mxu0 0.0
  %710 = vmatpush2.msra.mxu0 0.0
  %711 = vmatprep.mubr.f32.mxu0 0.0
  %712 = vmatmul.mubr.f32.gmra.mxu0 %v645
  %v713 = vpop.f32.mrf.mxu0
  %v714 = vadd.f32 %v642, %v713
  %v715 = vpop.f32.mrf.mxu0
  %716 = vdwg.mxu0
  %717 = vst [vmem:[%s13] sm:$0x7] %v714
  // Predicated region
  $region54: #{actor_vector_field_forward.1} parent=0 // pred_check
    _
  $region55: #{actor_vector_field_forward.1} parent=0 // pred_check_branch
    %719 = sbr.rel (0) target = $region57
  $region56: #{actor_vector_field_forward.1} parent=0 // pred_region
    _
  $region57: #{actor_vector_field_forward.1} parent=0 // pred_fallthru
    _
  // Predicated region
  $region58: #{actor_vector_field_forward.1} parent=0 // pred_check
    _
  $region59: #{actor_vector_field_forward.1} parent=0 // pred_check_branch
    %721 = sbr.rel (0) target = $region61
  $region60: #{actor_vector_field_forward.1} parent=0 // pred_region
    _
  $region61: #{actor_vector_field_forward.1} parent=0 // pred_fallthru
    _

</llo_original>
